<compile_context>
chip_gen: v7x
topology: tpu7x:2x2x1
jax: 0.10.0
libtpu: 0.0.40
codegen_flags: <defaults>
</compile_context>

<pallas_src>
import jax
import jax.numpy as jnp
from jax import lax
from jax.experimental import pallas as pl
from jax.experimental.pallas import tpu as pltpu

EMBEDDING_SIZE = 128
QUANTIZE_MIN_VAL = -2.0
QUANTIZE_MAX_VAL = +2.0
_SCALE = 255.0 / (QUANTIZE_MAX_VAL - QUANTIZE_MIN_VAL)

# Max rows per grid step. 4096 x 128 f32 input block = 2 MiB, bf16 output block = 1 MiB;
# with double buffering ~6 MiB + 32 KiB weight -> fits every generation's default scoped VMEM.
_MAX_TILE_B = 4096


def _postprocess_kernel(x_ref, eig_ref, bias_ref, o_ref):
    # x_ref:    (TILE_B, 128) caller dtype (f32 or bf16)
    # eig_ref:  (128, 128)    bf16   (E, untransposed; contraction below == x @ E^T)
    # bias_ref: (1, 128)      f32    (precomputed -(E @ means)^T)
    # o_ref:    (TILE_B, 128) bf16
    x = x_ref[...].astype(jnp.bfloat16)
    # pca[b, i] = sum_k x[b, k] * E[i, k]  (single-pass bf16 MXU, f32 accumulate)
    pca = lax.dot_general(
        x, eig_ref[...],
        dimension_numbers=(((1,), (1,)), ((), ())),
        preferred_element_type=jnp.float32,
    ) + bias_ref[...]
    clipped = jnp.clip(pca, QUANTIZE_MIN_VAL, QUANTIZE_MAX_VAL)
    quant = jnp.round((clipped - QUANTIZE_MIN_VAL) * _SCALE)   # exact integers in [0,255]
    o_ref[...] = quant.astype(o_ref.dtype)                     # bf16 is lossless here


def _round_up(n, m):
    return ((n + m - 1) // m) * m


def postprocess_pallas(x, pca_eigen_vectors, pca_means):
    """x: [B, 128] (f32 or bf16); pca_eigen_vectors: [128, 128]; pca_means: [128, 1]."""
    assert x.ndim == 2, f"Expected 2-d batch, got {x.shape!r}"
    assert x.shape[1] == EMBEDDING_SIZE, f"Bad batch shape: {x.shape!r}"
    B = x.shape[0]

    # Tiny one-time weight prep (outside the kernel; folded/CSE'd by XLA under jit).
    eig_f32 = pca_eigen_vectors.astype(jnp.float32)
    bias = -(eig_f32 @ pca_means.astype(jnp.float32)).reshape(1, EMBEDDING_SIZE)  # f32
    eig = eig_f32.astype(jnp.bfloat16)

    # Batch tile: multiple of 32 sublanes (future-proof for uint8 output, satisfies f32/bf16
    # tiling), capped at _MAX_TILE_B, and chosen so the grid has >= 2 steps whenever B > 32
    # so both v7x TensorCores get work.
    tile_b = min(_MAX_TILE_B, max(32, _round_up(pl.cdiv(B, 2), 32)))
    num_tiles = pl.cdiv(B, tile_b)   # ragged last block handled by Pallas boundary clipping

    bytes_accessed = (
        B * EMBEDDING_SIZE * jnp.dtype(x.dtype).itemsize   # x in
        + EMBEDDING_SIZE * EMBEDDING_SIZE * 2               # eigen vectors (bf16)
        + EMBEDDING_SIZE * 4                                # bias (f32)
        + B * EMBEDDING_SIZE * 2                            # out (bf16)
    )

    out = pl.pallas_call(
        _postprocess_kernel,
        out_shape=jax.ShapeDtypeStruct((B, EMBEDDING_SIZE), jnp.bfloat16),
        grid=(num_tiles,),
        in_specs=[
            pl.BlockSpec((tile_b, EMBEDDING_SIZE), lambda i: (i, 0)),
            pl.BlockSpec((EMBEDDING_SIZE, EMBEDDING_SIZE), lambda i: (0, 0)),
            pl.BlockSpec((1, EMBEDDING_SIZE), lambda i: (0, 0)),
        ],
        out_specs=pl.BlockSpec((tile_b, EMBEDDING_SIZE), lambda i: (i, 0)),
        compiler_params=pltpu.CompilerParams(
            dimension_semantics=("parallel",),
        ),
        cost_estimate=pl.CostEstimate(
            flops=2 * B * EMBEDDING_SIZE * EMBEDDING_SIZE,
            transcendentals=0,
            bytes_accessed=bytes_accessed,
        ),
    )(x, eig, bias)

    # torch.squeeze at the end (removes all size-1 dims, e.g. B==1 -> (128,)).
    return jnp.squeeze(out)


def postprocessor_forward(x, pca_eigen_vectors, pca_means, post_process=False):
    if post_process:
        return postprocess_pallas(x, pca_eigen_vectors, pca_means)
    return x


if __name__ == "__main__":
    key = jax.random.PRNGKey(0)
    k1, k2, k3 = jax.random.split(key, 3)

    B = 8
    x = jax.random.normal(k1, (B, EMBEDDING_SIZE), dtype=jnp.float32)

    # Deterministic synthetic "PCA" parameters (module __init__ only defines shapes).
    pca_eigen_vectors = jax.random.normal(
        k2, (EMBEDDING_SIZE, EMBEDDING_SIZE), dtype=jnp.float32) * 0.1
    pca_means = jax.random.normal(
        k3, (EMBEDDING_SIZE, 1), dtype=jnp.float32) * 0.05

    def ref_postprocess(xx):
        # Pure-JAX f32 reference mirroring the torch math exactly.
        centered_t = xx.T - pca_means                      # [128, B]
        r = (pca_eigen_vectors @ centered_t).T             # [B, 128]
        r = jnp.clip(r, QUANTIZE_MIN_VAL, QUANTIZE_MAX_VAL)
        return jnp.squeeze(jnp.round((r - QUANTIZE_MIN_VAL) * _SCALE))

    # post_process=False path: identity.
    y_identity = postprocessor_forward(x, pca_eigen_vectors, pca_means,
                                       post_process=False)
    assert y_identity.shape == x.shape

    # post_process=True path: Pallas kernel (single grid step).
    y = jax.block_until_ready(
        postprocessor_forward(x, pca_eigen_vectors, pca_means, post_process=True))
    ref = ref_postprocess(x)
    assert y.shape == ref.shape, (y.shape, ref.shape)
    # Bias folding + bf16 matmul re-associate the fp math; allow +-1 quantization-bin flips.
    assert jnp.max(jnp.abs(y.astype(jnp.float32) - ref)) <= 1.0

    # Multi-step grid with a ragged last block (checks boundary clipping, no pad/slice).
    B2 = 50
    x2 = jax.random.normal(jax.random.PRNGKey(7), (B2, EMBEDDING_SIZE), jnp.float32)
    y2 = jax.block_until_ready(
        postprocessor_forward(x2, pca_eigen_vectors, pca_means, post_process=True))
    ref2 = ref_postprocess(x2)
    assert y2.shape == (B2, EMBEDDING_SIZE), y2.shape
    assert jnp.max(jnp.abs(y2.astype(jnp.float32) - ref2)) <= 1.0

    print("KERNEL_OK")
</pallas_src>

<mosaic_0001>
module attributes {stable_mosaic.version = 11 : i64} {
  func.func @_postprocess_kernel(%arg0: i32, %arg1: memref<32x128xf32, #tpu.memory_space<vmem>>, %arg2: memref<128x128xbf16, #tpu.memory_space<vmem>>, %arg3: memref<1x128xf32, #tpu.memory_space<vmem>>, %arg4: memref<32x128xbf16, #tpu.memory_space<vmem>>) attributes {dimension_semantics = [#tpu.dimension_semantics<parallel>], iteration_bounds = array<i64: 1>, scalar_prefetch = 0 : i64, scratch_operands = 0 : i64, tpu.core_type = #tpu.core_type<tc>, window_params = [{transform_indices = @transform_0, window_bounds = array<i64: 32, 128>}, {pipeline_mode = #tpu.pipeline_mode<synchronous>, transform_indices = @transform_1, window_bounds = array<i64: 128, 128>}, {pipeline_mode = #tpu.pipeline_mode<synchronous>, transform_indices = @transform_2, window_bounds = array<i64: 1, 128>}, {transform_indices = @transform_3, window_bounds = array<i64: 32, 128>}]} {
    %c0 = arith.constant 0 : index
    %c0_0 = arith.constant 0 : index
    %0 = vector.load %arg1[%c0, %c0_0] : memref<32x128xf32, #tpu.memory_space<vmem>>, vector<32x128xf32>
    %1 = arith.truncf %0 : vector<32x128xf32> to vector<32x128xbf16>
    %c0_1 = arith.constant 0 : index
    %c0_2 = arith.constant 0 : index
    %2 = vector.load %arg2[%c0_1, %c0_2] : memref<128x128xbf16, #tpu.memory_space<vmem>>, vector<128x128xbf16>
    %cst = arith.constant dense<0.000000e+00> : vector<32x128xf32>
    %3 = tpu.matmul %1, %2, %cst {dimension_numbers = #tpu.dot_dimension_numbers<[1], [1], [0], [0], [0, 0, 1, 0], [], []>} : vector<32x128xbf16>, vector<128x128xbf16>, vector<32x128xf32> -> vector<32x128xf32>
    %c0_3 = arith.constant 0 : index
    %c0_4 = arith.constant 0 : index
    %4 = vector.load %arg3[%c0_3, %c0_4] : memref<1x128xf32, #tpu.memory_space<vmem>>, vector<1x128xf32>
    %5 = vector.broadcast %4 : vector<1x128xf32> to vector<32x128xf32>
    %6 = arith.addf %3, %5 : vector<32x128xf32>
    %cst_5 = arith.constant -2.000000e+00 : f32
    %cst_6 = arith.constant 2.000000e+00 : f32
    %7 = vector.broadcast %cst_5 : f32 to vector<32x128xf32>
    %8 = arith.maximumf %7, %6 : vector<32x128xf32>
    %9 = vector.broadcast %cst_6 : f32 to vector<32x128xf32>
    %10 = arith.minimumf %9, %8 : vector<32x128xf32>
    %cst_7 = arith.constant -2.000000e+00 : f32
    %11 = vector.broadcast %cst_7 : f32 to vector<32x128xf32>
    %12 = arith.subf %10, %11 : vector<32x128xf32>
    %cst_8 = arith.constant 6.375000e+01 : f32
    %13 = vector.broadcast %cst_8 : f32 to vector<32x128xf32>
    %14 = arith.mulf %12, %13 : vector<32x128xf32>
    %15 = math.roundeven %14 : vector<32x128xf32>
    %16 = arith.truncf %15 : vector<32x128xf32> to vector<32x128xbf16>
    %c0_9 = arith.constant 0 : index
    %c0_10 = arith.constant 0 : index
    %17 = vector.load %arg4[%c0_9, %c0_10] : memref<32x128xbf16, #tpu.memory_space<vmem>>, vector<32x128xbf16>
    tpu.vector_store %arg4[%c0_9, %c0_10], %16 {strides = array<i32>} : memref<32x128xbf16, #tpu.memory_space<vmem>>, vector<32x128xbf16>,
    return
  }
  func.func @transform_0(%arg0: i32) -> (i32, i32) {
    %c0_i32 = arith.constant 0 : i32
    %c0_i32_0 = arith.constant 0 : i32
    return %arg0, %c0_i32 : i32, i32
  }
  func.func @transform_1(%arg0: i32) -> (i32, i32) {
    %c0_i32 = arith.constant 0 : i32
    %c0_i32_0 = arith.constant 0 : i32
    %c0_i32_1 = arith.constant 0 : i32
    return %c0_i32, %c0_i32_0 : i32, i32
  }
  func.func @transform_2(%arg0: i32) -> (i32, i32) {
    %c0_i32 = arith.constant 0 : i32
    %c0_i32_0 = arith.constant 0 : i32
    %c0_i32_1 = arith.constant 0 : i32
    return %c0_i32, %c0_i32_0 : i32, i32
  }
  func.func @transform_3(%arg0: i32) -> (i32, i32) {
    %c0_i32 = arith.constant 0 : i32
    %c0_i32_0 = arith.constant 0 : i32
    return %arg0, %c0_i32 : i32, i32
  }
}

</mosaic_0001>

<llo_original>
// kernel: tpu_custom_call.1
$region0: #{tpu_custom_call.1}
  #allocation0 [shape = 'u32[]', space=smem, size = 0x4, offset = 0x4, fixed_abs, tag = 'smem constant byte address 0x4 - core index']
  #allocation1 [shape = 'u32[144,128]{1,0:T(1,128)}', space=vmem, size = 0x12000, scoped, tag = 'internal scratch']
  %s0 = inlined_call_operand.hbm [shape: f32[8,128], index: 0, kind: input, shape index: {}]
  %s1 = inlined_call_operand.hbm [shape: bf16[128,128], index: 1, kind: input, shape index: {}]
  %s2 = inlined_call_operand.vmem [shape: f32[1,128], index: 2, kind: input, shape index: {}]
  %s3 = inlined_call_operand.hbm [shape: bf16[8,128], index: 3, kind: output, shape index: {}]
  %s4 = sld [smem:[#allocation0]]
  $region30: #{tpu_custom_call.1} parent=0
    _
  %s6 = ssub.s32 1, %s4
  %s7 = scalar_select 0, %s6, %s4
  $region1: #{tpu_custom_call.1} parent=0
    #allocation2 [shape = 'u8[16384]{0}', space=vmem, size = 0x4000, scoped, tag = 'input window, operand 0, single buffered']
    #allocation3 [shape = 's32[1]{0}', space=sflag, size = 0x4, scoped, tag = 'scoped memory for tpu_custom_call.1']
    #allocation4 [shape = 's32[1]{0}', space=sflag, size = 0x4, scoped, tag = 'scoped memory for tpu_custom_call.1']
    #allocation5 [shape = 'u8[32768]{0}', space=vmem, size = 0x8000, scoped, tag = 'input window, operand 1, single buffered']
    #allocation6 [shape = 's32[1]{0}', space=sflag, size = 0x4, scoped, tag = 'scoped memory for tpu_custom_call.1']
    #allocation7 [shape = 'u8[8192]{0}', space=vmem, size = 0x2000, scoped, tag = 'output window, operand 0, single buffered']
    %8 = vsyncpa [#allocation3], 0
    %9 = vsyncpa [#allocation6], 0
    %10 = vsyncpa [#allocation4], 0
    // Predicated region
    $region2: #{tpu_custom_call.1} parent=1 // pred_check
      _
    $region3: #{tpu_custom_call.1} parent=1 // pred_check_branch
      %12 = sbr.rel (0) target = $region5
    $region4: #{tpu_custom_call.1} parent=1 // pred_region
      %s14 = ssub.s32 512, 128
      %15 = vsyncadd [#allocation3], %s14
      %s16 = sshll.u32 [#allocation2], 4
      %s17 = int_to_ptr.vmem [resolvable:$true] %s16
      %22 = dma.hbm_to_vmem [thread:$0]  %s0, 128, %s17, [#allocation3], 128, 128, 8
    $region5: #{tpu_custom_call.1} parent=1 // pred_fallthru
      _
    // Predicated region
    $region6: #{tpu_custom_call.1} parent=1 // pred_check
      _
    $region7: #{tpu_custom_call.1} parent=1 // pred_check_branch
      %24 = sbr.rel (0) target = $region9
    $region8: #{tpu_custom_call.1} parent=1 // pred_region
      %s26 = ssub.s32 1024, 1024
      %27 = vsyncadd [#allocation6], %s26
      %s28 = sshll.u32 [#allocation5], 4
      %s29 = int_to_ptr.vmem [resolvable:$true] %s28
      %34 = dma.hbm_to_vmem [thread:$0]  %s1, 1024, %s29, [#allocation6], 64, 64, 4
    $region9: #{tpu_custom_call.1} parent=1 // pred_fallthru
      _
    // Predicated region
    $region10: #{tpu_custom_call.1} parent=1 // pred_check
      _
    $region11: #{tpu_custom_call.1} parent=1 // pred_check_branch
      %36 = sbr.rel (0) target = $region13
    $region12: #{tpu_custom_call.1} parent=1 // pred_region
      _
    $region13: #{tpu_custom_call.1} parent=1 // pred_fallthru
      _
    // Predicated region
    $region14: #{tpu_custom_call.1} parent=1 // pred_check
      _
    $region15: #{tpu_custom_call.1} parent=1 // pred_check_branch
      %38 = sbr.rel (0) target = $region17
    $region16: #{tpu_custom_call.1} parent=1 // pred_region
      %39 = dma.done [#allocation3], 512
    $region17: #{tpu_custom_call.1} parent=1 // pred_fallthru
      _
    // Predicated region
    $region18: #{tpu_custom_call.1} parent=1 // pred_check
      _
    $region19: #{tpu_custom_call.1} parent=1 // pred_check_branch
      %41 = sbr.rel (0) target = $region21
    $region20: #{tpu_custom_call.1} parent=1 // pred_region
      %42 = dma.done [#allocation6], 1024
    $region21: #{tpu_custom_call.1} parent=1 // pred_fallthru
      _
    %v44 = vld [vmem:[#allocation2] sm:$0xff]
    %v45 = vld [vmem:[#allocation2 + $0x8] sm:$0xff]
    %v46 = vld [vmem:[#allocation2 + $0x10] sm:$0xff]
    %v47 = vld [vmem:[#allocation2 + $0x18] sm:$0xff]
    %v48 = vpack.c.bf16 %v45, %v44
    %v49 = vpack.c.bf16 %v47, %v46
    %v50 = vld [vmem:[#allocation5] sm:$0xf]
    %v51 = vld [vmem:[#allocation5 + $0x4] sm:$0xf]
    %v52 = vld [vmem:[#allocation5 + $0x8] sm:$0xf]
    %v53 = vld [vmem:[#allocation5 + $0xc] sm:$0xf]
    %v54 = vld [vmem:[#allocation5 + $0x10] sm:$0xf]
    %v55 = vld [vmem:[#allocation5 + $0x14] sm:$0xf]
    %v56 = vld [vmem:[#allocation5 + $0x18] sm:$0xf]
    %v57 = vld [vmem:[#allocation5 + $0x1c] sm:$0xf]
    %v58 = vld [vmem:[#allocation5 + $0x20] sm:$0xf]
    %v59 = vld [vmem:[#allocation5 + $0x24] sm:$0xf]
    %v60 = vld [vmem:[#allocation5 + $0x28] sm:$0xf]
    %v61 = vld [vmem:[#allocation5 + $0x2c] sm:$0xf]
    %v62 = vld [vmem:[#allocation5 + $0x30] sm:$0xf]
    %v63 = vld [vmem:[#allocation5 + $0x34] sm:$0xf]
    %v64 = vld [vmem:[#allocation5 + $0x38] sm:$0xf]
    %v65 = vld [vmem:[#allocation5 + $0x3c] sm:$0xf]
    %v66 = vld [vmem:[%s2] sm:$0x1]
    %v68 = vlaneseq
    %v69 = vshrl.u32 %v68, 7
    %v70 = vsub.s32 0, %v69
    %v71 = vrot.slane %v66, %v70
    %v89 = vunpack.c.l.b16 %v50
    %v90 = vunpack.c.l.b16 %v51
    %v91 = vunpack.c.l.b16 %v52
    %v92 = vunpack.c.l.b16 %v53
    %v93 = vunpack.c.l.b16 %v54
    %v94 = vunpack.c.l.b16 %v55
    %v95 = vunpack.c.l.b16 %v56
    %v96 = vunpack.c.l.b16 %v57
    %v97 = vunpack.c.l.b16 %v58
    %v98 = vunpack.c.l.b16 %v59
    %v99 = vunpack.c.l.b16 %v60
    %v100 = vunpack.c.l.b16 %v61
    %v101 = vunpack.c.l.b16 %v62
    %v102 = vunpack.c.l.b16 %v63
    %v103 = vunpack.c.l.b16 %v64
    %v104 = vunpack.c.l.b16 %v65
    %v105 = vpack.c.b16 %v90, %v89
    %v106 = vpack.c.b16 %v92, %v91
    %v107 = vpack.c.b16 %v94, %v93
    %v108 = vpack.c.b16 %v96, %v95
    %v109 = vpack.c.b16 %v98, %v97
    %v110 = vpack.c.b16 %v100, %v99
    %v111 = vpack.c.b16 %v102, %v101
    %v112 = vpack.c.b16 %v104, %v103
    %121 = vmatprep.subr.bf16.mxu0 0
    %122 = vmatpush1.bf16.xpose.msra.mxu0 %v105
    %123 = vmatprep.subr.bf16.mxu0 0
    %124 = vmatpush1.bf16.xpose.msra.mxu0 %v106
    %125 = vmatprep.subr.bf16.mxu0 0
    %126 = vmatpush1.bf16.xpose.msra.mxu0 %v107
    %127 = vmatprep.subr.bf16.mxu0 0
    %128 = vmatpush1.bf16.xpose.msra.mxu0 %v108
    %129 = vmatprep.subr.bf16.mxu0 0
    %130 = vmatpush1.bf16.xpose.msra.mxu0 %v109
    %131 = vmatprep.subr.bf16.mxu0 0
    %132 = vmatpush1.bf16.xpose.msra.mxu0 %v110
    %133 = vmatprep.subr.bf16.mxu0 0
    %134 = vmatpush1.bf16.xpose.msra.mxu0 %v111
    %135 = vmatprep.subr.bf16.mxu0 0
    %136 = vmatpush1.bf16.xpose.msra.mxu0 %v112
    %137 = vmatprep.subr.bf16.mxu0 0
    %138 = vmatpush1.bf16.xpose.msra.mxu0 0
    %139 = vmatprep.subr.bf16.mxu0 0
    %140 = vmatpush1.bf16.xpose.msra.mxu0 0
    %141 = vmatprep.subr.bf16.mxu0 0
    %142 = vmatpush1.bf16.xpose.msra.mxu0 0
    %143 = vmatprep.subr.bf16.mxu0 0
    %144 = vmatpush1.bf16.xpose.msra.mxu0 0
    %145 = vmatprep.subr.bf16.mxu0 0
    %146 = vmatpush1.bf16.xpose.msra.mxu0 0
    %147 = vmatprep.subr.bf16.mxu0 0
    %148 = vmatpush1.bf16.xpose.msra.mxu0 0
    %149 = vmatprep.subr.bf16.mxu0 0
    %150 = vmatpush1.bf16.xpose.msra.mxu0 0
    %151 = vmatprep.subr.bf16.mxu0 0
    %152 = vmatpush1.bf16.xpose.msra.mxu0 0
    %153 = vmatprep.mubr.bf16.mxu0 0
    %154 = vmatmul.mubr.bf16.gmra.mrb[0].mxu0 %v48
    %v155 = vpop.f32.mrb[0].mxu0
    %v156 = vadd.f32 %v71, %v155
    %v157 = vpop.f32.mrb[0].mxu0
    %v158 = vpop.f32.mrb[0].mxu0
    %v159 = vadd.f32 %v71, %v158
    %v160 = vpop.f32.mrb[0].mxu0
    %161 = vmatprep.mubr.bf16.mxu0 0
    %162 = vmatmul.mubr.bf16.gmra.mrb[0].mxu0 %v49
    %v163 = vpop.f32.mrb[0].mxu0
    %v164 = vadd.f32 %v71, %v163
    %v165 = vpop.f32.mrb[0].mxu0
    %v166 = vpop.f32.mrb[0].mxu0
    %v167 = vadd.f32 %v71, %v166
    %v168 = vpop.f32.mrb[0].mxu0
    %169 = vdwg.mxu0
    %v170 = vmax.f32 %v156, -2.0
    %v171 = vmax.f32 %v159, -2.0
    %v172 = vmax.f32 %v164, -2.0
    %v173 = vmax.f32 %v167, -2.0
    %v174 = vmin.f32 %v170, 2.0
    %v175 = vmin.f32 %v171, 2.0
    %v176 = vmin.f32 %v172, 2.0
    %v177 = vmin.f32 %v173, 2.0
    %v178 = vsub.f32 %v174, -2.0
    %v179 = vsub.f32 %v175, -2.0
    %v180 = vsub.f32 %v176, -2.0
    %v181 = vsub.f32 %v177, -2.0
    %v182 = vmul.f32 %v178, 63.75
    %v183 = vmul.f32 %v179, 63.75
    %v184 = vmul.f32 %v180, 63.75
    %v185 = vmul.f32 %v181, 63.75
    %v186 = vround.ne.pseudo %v182
    %v187 = vround.ne.pseudo %v183
    %v188 = vround.ne.pseudo %v184
    %v189 = vround.ne.pseudo %v185
    %v190 = vpack.c.bf16 %v187, %v186
    %v191 = vpack.c.bf16 %v189, %v188
    %v194 = vunpack.c.l.b16 %v190
    %v195 = vunpack.c.h.b16 %v190
    %v196 = vunpack.c.l.b16 %v191
    %v197 = vunpack.c.h.b16 %v191
    %v198 = vpack.c.b16 %v194, %v194
    %v199 = vpack.c.b16 %v195, %v195
    %v200 = vpack.c.b16 %v196, %v196
    %v201 = vpack.c.b16 %v197, %v197
    %206 = vst [vmem:[#allocation7] sm:$0xf] %v198
    %207 = vst [vmem:[#allocation7 + $0x4] sm:$0xf] %v199
    %208 = vst [vmem:[#allocation7 + $0x8] sm:$0xf] %v200
    %209 = vst [vmem:[#allocation7 + $0xc] sm:$0xf] %v201
    // Predicated region
    $region22: #{tpu_custom_call.1} parent=1 // pred_check
      _
    $region23: #{tpu_custom_call.1} parent=1 // pred_check_branch
      %211 = sbr.rel (0) target = $region25
    $region24: #{tpu_custom_call.1} parent=1 // pred_region
      %s213 = ssub.s32 256, 64
      %214 = vsyncadd [#allocation4], %s213
      %s215 = sshll.u32 [#allocation7], 4
      %s216 = int_to_ptr.vmem [resolvable:$true] %s215
      %221 = dma.vmem_to_hbm [thread:$0]  %s216, 64, %s3, [#allocation4], 64, 64, 4
    $region25: #{tpu_custom_call.1} parent=1 // pred_fallthru
      _
    // Predicated region
    $region26: #{tpu_custom_call.1} parent=1 // pred_check
      _
    $region27: #{tpu_custom_call.1} parent=1 // pred_check_branch
      %223 = sbr.rel (0) target = $region29
    $region28: #{tpu_custom_call.1} parent=1 // pred_region
      %224 = dma.done [#allocation4], 256
    $region29: #{tpu_custom_call.1} parent=1 // pred_fallthru
      _
    %225 = vsyncpa [#allocation3], 1
    %226 = vsyncpa [#allocation6], 1
    %227 = vsyncpa [#allocation4], 1

</llo_original>
